<compile_context>
chip_gen: v5e
topology: v5e:2x2
jax: 0.10.0
libtpu: 0.0.40
codegen_flags: <defaults>
</compile_context>

<pallas_src>
import jax
import jax.numpy as jnp
from jax.experimental import pallas as pl
from jax.experimental.pallas import tpu as pltpu


def _multi_noise_loss_kernel(losses_ref, noise_ref, out_ref):
    # losses_ref, noise_ref: (1, N) in VMEM; out_ref: (1, 1) f32 in SMEM.
    losses = losses_ref[...].astype(jnp.float32)
    noise = noise_ref[...].astype(jnp.float32)
    term = losses / (noise * noise) + jnp.log(noise)
    out_ref[0, 0] = jnp.sum(term)


def multi_noise_loss(losses, noise_params):
    """losses, noise_params: (n_losses,) -> scalar f32 total loss."""
    n = losses.shape[0]
    # 2-D views for vreg-friendly refs; no cast / no stack in the wrapper
    # (reshape of a 1-D array is free metadata, unlike the previous jnp.stack).
    losses_2d = losses.reshape(1, n)
    noise_2d = noise_params.reshape(1, n)

    out = pl.pallas_call(
        _multi_noise_loss_kernel,
        out_shape=jax.ShapeDtypeStruct((1, 1), jnp.float32),
        # Full-array (memory-space only) blocks sidestep the (8, 128)
        # divisibility constraint; no grid -> no per-step bookkeeping.
        in_specs=[
            pl.BlockSpec(memory_space=pltpu.MemorySpace.VMEM),
            pl.BlockSpec(memory_space=pltpu.MemorySpace.VMEM),
        ],
        out_specs=pl.BlockSpec(memory_space=pltpu.MemorySpace.SMEM),
        cost_estimate=pl.CostEstimate(
            flops=5 * n,
            transcendentals=2 * n,
            bytes_accessed=n * losses.dtype.itemsize
            + n * noise_params.dtype.itemsize
            + 4,
        ),
    )(losses_2d, noise_2d)
    return out[0, 0]


def multi_noise_loss_ref(losses, noise_params):
    # Plain-JAX reference. In a real training graph prefer this form: XLA fuses
    # it with the producer of `losses` and it is autodiff-friendly.
    return jnp.sum(losses / jnp.square(noise_params) + jnp.log(noise_params))


if __name__ == "__main__":
    n_losses = 8

    key = jax.random.PRNGKey(0)
    k_noise, k_losses = jax.random.split(key)

    # torch.rand equivalent is U[0,1); keep noise away from 0 so that
    # losses/noise^2 and log(noise) stay finite (the same hazard exists in the
    # original PyTorch module when params are near 0 or trained negative).
    noise_params = jax.random.uniform(
        k_noise, (n_losses,), dtype=jnp.float32, minval=0.1, maxval=1.0
    )
    losses = jax.random.uniform(k_losses, (n_losses,), dtype=jnp.float32)

    total = multi_noise_loss(losses, noise_params)
    total = jax.block_until_ready(total)

    ref = multi_noise_loss_ref(losses, noise_params)
    assert jnp.allclose(total, ref, rtol=1e-5, atol=1e-5), (total, ref)

    print("KERNEL_OK")
</pallas_src>

<mosaic_0001>
module attributes {stable_mosaic.version = 11 : i64} {
  func.func @_multi_noise_loss_kernel(%arg0: memref<1x8xf32, #tpu.memory_space<vmem>>, %arg1: memref<1x8xf32, #tpu.memory_space<vmem>>, %arg2: memref<1x1xf32, #tpu.memory_space<smem>>) attributes {dimension_semantics = [], scalar_prefetch = 0 : i64, scratch_operands = 0 : i64, tpu.core_type = #tpu.core_type<tc>} {
    %c0 = arith.constant 0 : index
    %c0_0 = arith.constant 0 : index
    %0 = vector.load %arg0[%c0, %c0_0] : memref<1x8xf32, #tpu.memory_space<vmem>>, vector<1x8xf32>
    %c0_1 = arith.constant 0 : index
    %c0_2 = arith.constant 0 : index
    %1 = vector.load %arg1[%c0_1, %c0_2] : memref<1x8xf32, #tpu.memory_space<vmem>>, vector<1x8xf32>
    %2 = arith.mulf %1, %1 : vector<1x8xf32>
    %3 = arith.divf %0, %2 : vector<1x8xf32>
    %4 = math.log %1 : vector<1x8xf32>
    %5 = arith.addf %3, %4 : vector<1x8xf32>
    %6 = vector.shape_cast %5 : vector<1x8xf32> to vector<1x1x8xf32>
    %cst = arith.constant dense<0.000000e+00> : vector<1xf32>
    %7 = vector.multi_reduction <add>, %6, %cst [1, 2] : vector<1x1x8xf32> to vector<1xf32>
    %8 = vector.shape_cast %7 : vector<1xf32> to vector<1x1x1xf32>
    %9 = vector.extract %8[0, 0, 0] : f32 from vector<1x1x1xf32>
    %c0_3 = arith.constant 0 : index
    %c0_4 = arith.constant 0 : index
    %10 = memref.load %arg2[%c0_3, %c0_4] : memref<1x1xf32, #tpu.memory_space<smem>>
    memref.store %9, %arg2[%c0_3, %c0_4] : memref<1x1xf32, #tpu.memory_space<smem>>
    return
  }
}

</mosaic_0001>

<llo_original>
// kernel: tpu_custom_call.1
$region0: #{tpu_custom_call.1}
  #allocation0 [shape = 'u32[]', space=smem, size = 0x4, offset = 0x4, fixed_abs, tag = 'smem constant byte address 0x4 - core index']
  #allocation1 [shape = 'u32[72,128]{1,0:T(1,128)}', space=vmem, size = 0x9000, scoped, tag = 'internal scratch']
  %s0 = inlined_call_operand.hbm [shape: f32[1,8], index: 0, kind: input, shape index: {}]
  %s1 = inlined_call_operand.hbm [shape: f32[1,8], index: 1, kind: input, shape index: {}]
  %s2 = inlined_call_operand.hbm [shape: f32[1,1], index: 2, kind: output, shape index: {}]
  %s3 = sld [smem:[#allocation0]]
  $region26: #{tpu_custom_call.1} parent=0
    _
  %s5 = ssub.s32 1, %s3
  %s6 = scalar_select 0, %s5, %s3
  $region1: #{tpu_custom_call.1} parent=0
    #allocation2 [shape = 'u8[512]{0}', space=vmem, size = 0x400, scoped, tag = 'input window, operand 0, single buffered']
    #allocation3 [shape = 's32[1]{0}', space=sflag, size = 0x4, scoped, tag = 'scoped memory for tpu_custom_call.1']
    #allocation4 [shape = 's32[1]{0}', space=sflag, size = 0x4, scoped, tag = 'scoped memory for tpu_custom_call.1']
    #allocation5 [shape = 'u8[512]{0}', space=vmem, size = 0x400, scoped, tag = 'input window, operand 1, single buffered']
    #allocation6 [shape = 's32[1]{0}', space=sflag, size = 0x4, scoped, tag = 'scoped memory for tpu_custom_call.1']
    #allocation7 [shape = 'u8[512]{0}', space=smem, size = 0x200, scoped, tag = 'output window, operand 0, single buffered']
    %7 = vsyncpa [#allocation3], 0
    %8 = vsyncpa [#allocation6], 0
    %9 = vsyncpa [#allocation4], 0
    // Predicated region
    $region2: #{tpu_custom_call.1} parent=1 // pred_check
      _
    $region3: #{tpu_custom_call.1} parent=1 // pred_check_branch
      %11 = sbr.rel (0) target = $region5
    $region4: #{tpu_custom_call.1} parent=1 // pred_region
      %13 = vsyncadd [#allocation3], 0
      %s15 = sshll.u32 %s0, 4
      %s16 = int_to_ptr.hbm [resolvable:$true] %s15
      %s17 = sshll.u32 [#allocation2], 4
      %s18 = int_to_ptr.vmem [resolvable:$true] %s17
      %20 = dma.hbm_to_vmem [thread:$0]  %s16, 16, %s18, [#allocation3]
    $region5: #{tpu_custom_call.1} parent=1 // pred_fallthru
      _
    // Predicated region
    $region6: #{tpu_custom_call.1} parent=1 // pred_check
      _
    $region7: #{tpu_custom_call.1} parent=1 // pred_check_branch
      %22 = sbr.rel (0) target = $region9
    $region8: #{tpu_custom_call.1} parent=1 // pred_region
      %24 = vsyncadd [#allocation6], 0
      %s26 = sshll.u32 %s1, 4
      %s27 = int_to_ptr.hbm [resolvable:$true] %s26
      %s28 = sshll.u32 [#allocation5], 4
      %s29 = int_to_ptr.vmem [resolvable:$true] %s28
      %31 = dma.hbm_to_vmem [thread:$0]  %s27, 16, %s29, [#allocation6]
    $region9: #{tpu_custom_call.1} parent=1 // pred_fallthru
      _
    // Predicated region
    $region10: #{tpu_custom_call.1} parent=1 // pred_check
      _
    $region11: #{tpu_custom_call.1} parent=1 // pred_check_branch
      %33 = sbr.rel (0) target = $region13
    $region12: #{tpu_custom_call.1} parent=1 // pred_region
      %35 = dma.done [#allocation3], 16
    $region13: #{tpu_custom_call.1} parent=1 // pred_fallthru
      _
    // Predicated region
    $region14: #{tpu_custom_call.1} parent=1 // pred_check
      _
    $region15: #{tpu_custom_call.1} parent=1 // pred_check_branch
      %37 = sbr.rel (0) target = $region17
    $region16: #{tpu_custom_call.1} parent=1 // pred_region
      %39 = dma.done [#allocation6], 16
    $region17: #{tpu_custom_call.1} parent=1 // pred_fallthru
      _
    %v40 = vld [vmem:[#allocation2] sm:$0x1]
    %v41 = vld [vmem:[#allocation5] sm:$0x1]
    %v42 = vmul.f32 %v41, %v41
    %v43 = vrcp.pop %v42
    %v44 = vmul.f32 %v42, %v43
    %v45 = vsub.f32 1.0, %v44
    %v46 = vmul.f32 %v43, %v45
    %v47 = vadd.f32 %v43, %v46
    %vm48 = vweird.f32 %v42
    %vm49 = vweird.f32 %v43
    %vm50 = vmor %vm48, %vm49
    %v51 = vsel %vm50, %v43, %v47
    %v52 = vand.u32 2147483647, %v42
    %vm53 = vcmp.eq.f32.partialorder %v52, 8.507059e+37
    %v54 = vand.u32 %v42, 2147483648
    %v55 = vor.u32 1.1754944e-38, %v54
    %v56 = vsel %vm53, %v55, %v51
    %v57 = vmul.f32 %v40, %v56
    %v58 = vlog2.pop %v41
    %v59 = vmul.f32 %v58, 0.6931472
    %v60 = vadd.f32 %v57, %v59
    %vm61 = vcmask 57344
    %v62 = vsel %vm61, %v60, 0.0
    %63 = vadd.xlane.f32.xlu0 %v62
    %v64 = vpop.xlane.xlu0 %63
    %v65 = vrot.slane %v64, 4
    %v66 = vadd.f32 %v64, %v65
    %v67 = vrot.slane %v66, 2
    %v68 = vadd.f32 %v66, %v67
    %v69 = vrot.slane %v68, 1
    %v70 = vadd.f32 %v68, %v69
    %s71 = vtos %v70
    %s72 = scalar_lea.smem [#allocation7], 0
    %73 = sst [smem:[%s72]] %s71
    // Predicated region
    $region18: #{tpu_custom_call.1} parent=1 // pred_check
      _
    $region19: #{tpu_custom_call.1} parent=1 // pred_check_branch
      %75 = sbr.rel (0) target = $region21
    $region20: #{tpu_custom_call.1} parent=1 // pred_region
      %77 = vsyncadd [#allocation4], 0
      %s79 = sshll.u32 %s2, 4
      %s80 = int_to_ptr.hbm [resolvable:$true] %s79
      %82 = dma.smem_to_hbm [#allocation7], 16, %s80, [#allocation4]
    $region21: #{tpu_custom_call.1} parent=1 // pred_fallthru
      _
    // Predicated region
    $region22: #{tpu_custom_call.1} parent=1 // pred_check
      _
    $region23: #{tpu_custom_call.1} parent=1 // pred_check_branch
      %84 = sbr.rel (0) target = $region25
    $region24: #{tpu_custom_call.1} parent=1 // pred_region
      %86 = dma.done [#allocation4], 16
    $region25: #{tpu_custom_call.1} parent=1 // pred_fallthru
      _
    %87 = sfence
    %88 = vsyncpa [#allocation3], 1
    %89 = vsyncpa [#allocation6], 1
    %90 = vsyncpa [#allocation4], 1

</llo_original>
